<compile_context>
chip_gen: v7x
topology: tpu7x:2x2x1
jax: 0.10.0
libtpu: 0.0.40
codegen_flags: <defaults>
</compile_context>

<pallas_src>
import jax
import jax.numpy as jnp
from jax import lax
from jax.experimental import pallas as pl
from jax.experimental.pallas import tpu as pltpu


def _head_kernel(x_ref, wk_ref, wq_ref, wv_ref, o_ref):
    # x_ref: (Bb, T, C) bf16 block; w*_ref: (C, H) bf16 (pre-transposed in wrapper)
    x = x_ref[...]
    Bb, T, C = x.shape
    wk = wk_ref[...]
    wq = wq_ref[...]
    wv = wv_ref[...]

    # Projections: bf16 MXU matmuls with f32 accumulation. Weights are already
    # (C, H) so the contraction needs no in-kernel transpose.
    k = jnp.einsum('btc,ch->bth', x, wk, preferred_element_type=jnp.float32)
    q = jnp.einsum('btc,ch->bth', x, wq, preferred_element_type=jnp.float32)
    v = jnp.einsum('btc,ch->bth', x, wv, preferred_element_type=jnp.float32)

    # Scores: contract the head dim directly (no .T) — batched MXU matmul.
    scale = jnp.float32(C ** -0.5)  # reference scales by num_embed, not head_size
    s = jnp.einsum('bqh,bkh->bqk',
                   q.astype(jnp.bfloat16), k.astype(jnp.bfloat16),
                   preferred_element_type=jnp.float32) * scale

    # Causal (lower-triangular) mask.
    row = lax.broadcasted_iota(jnp.int32, (T, T), 0)
    col = lax.broadcasted_iota(jnp.int32, (T, T), 1)
    s = jnp.where((col <= row)[None, :, :], s, jnp.float32(-jnp.inf))

    # Numerically stable softmax in f32; reciprocal on the EUP (approx vrcp).
    s = s - jnp.max(s, axis=-1, keepdims=True)
    p = jnp.exp(s)
    p = p * pl.reciprocal(jnp.sum(p, axis=-1, keepdims=True), approx=True)

    # Dropout on attention weights: identity in eval mode.

    out = jnp.einsum('bqk,bkh->bqh',
                     p.astype(jnp.bfloat16), v.astype(jnp.bfloat16),
                     preferred_element_type=jnp.float32)
    o_ref[...] = out.astype(o_ref.dtype)


def head_forward(x, wk, wq, wv, *, batch_block=None):
    """x: (B, T, C) f32; wk/wq/wv: (H, C) f32 (PyTorch layout) -> (B, T, H) f32."""
    B, T, C = x.shape
    H = wk.shape[0]

    if batch_block is None:
        # Largest divisor of B that is <= 8: tiny problems run in one grid step,
        # larger B still gets several parallel steps (feeds both v7x TCs).
        batch_block = next(bb for bb in range(min(B, 8), 0, -1) if B % bb == 0)
    assert B % batch_block == 0

    # bf16 operands feed the MXU at full rate; pre-transpose weights to (C, H)
    # so the kernel never transposes.
    xb = x.astype(jnp.bfloat16)
    wkt = jnp.transpose(wk).astype(jnp.bfloat16)
    wqt = jnp.transpose(wq).astype(jnp.bfloat16)
    wvt = jnp.transpose(wv).astype(jnp.bfloat16)

    grid_spec = pltpu.PrefetchScalarGridSpec(
        num_scalar_prefetch=0,
        grid=(B // batch_block,),
        in_specs=[
            pl.BlockSpec((batch_block, T, C), lambda b: (b, 0, 0)),  # x batch block
            pl.BlockSpec((C, H), lambda b: (0, 0)),                  # Wk^T (VMEM-resident)
            pl.BlockSpec((C, H), lambda b: (0, 0)),                  # Wq^T
            pl.BlockSpec((C, H), lambda b: (0, 0)),                  # Wv^T
        ],
        out_specs=pl.BlockSpec((batch_block, T, H), lambda b: (b, 0, 0)),
    )

    return pl.pallas_call(
        _head_kernel,
        out_shape=jax.ShapeDtypeStruct((B, T, H), jnp.float32),
        grid_spec=grid_spec,
        compiler_params=pltpu.CompilerParams(
            dimension_semantics=("parallel",),
        ),
    )(xb, wkt, wqt, wvt)


def head_reference(x, wk, wq, wv):
    """Plain-JAX f32 reference mirroring the PyTorch forward (eval mode)."""
    B, T, C = x.shape
    k = x @ wk.T
    q = x @ wq.T
    v = x @ wv.T
    att = (q @ jnp.swapaxes(k, -2, -1)) * (C ** -0.5)
    mask = jnp.tril(jnp.ones((T, T), dtype=bool))
    att = jnp.where(mask[None, :, :], att, -jnp.inf)
    att = jax.nn.softmax(att, axis=-1)
    return att @ v


if __name__ == "__main__":
    # Shapes consistent with the module: batch=2, block_size (seq)=8,
    # num_embed=32, head_size=16.
    B, T, C, H = 2, 8, 32, 16

    key = jax.random.PRNGKey(0)
    kx, kk, kq, kv = jax.random.split(key, 4)

    x = jax.random.normal(kx, (B, T, C), dtype=jnp.float32)
    bound = 1.0 / (C ** 0.5)
    wk = jax.random.uniform(kk, (H, C), minval=-bound, maxval=bound, dtype=jnp.float32)
    wq = jax.random.uniform(kq, (H, C), minval=-bound, maxval=bound, dtype=jnp.float32)
    wv = jax.random.uniform(kv, (H, C), minval=-bound, maxval=bound, dtype=jnp.float32)

    out = jax.block_until_ready(head_forward(x, wk, wq, wv))
    ref = jax.block_until_ready(head_reference(x, wk, wq, wv))

    assert out.shape == (B, T, H)
    # bf16 matmul operands (f32 accumulation / f32 softmax) vs an all-f32
    # reference -> compare at bf16-appropriate tolerance.
    assert jnp.allclose(out, ref, atol=3e-2, rtol=3e-2), "mismatch vs reference"

    print("KERNEL_OK")
</pallas_src>

<mosaic_0001>
module attributes {stable_mosaic.version = 11 : i64} {
  func.func @_head_kernel(%arg0: i32, %arg1: memref<2x8x32xbf16, #tpu.memory_space<vmem>>, %arg2: memref<32x16xbf16, #tpu.memory_space<vmem>>, %arg3: memref<32x16xbf16, #tpu.memory_space<vmem>>, %arg4: memref<32x16xbf16, #tpu.memory_space<vmem>>, %arg5: memref<2x8x16xf32, #tpu.memory_space<vmem>>) attributes {dimension_semantics = [#tpu.dimension_semantics<parallel>], iteration_bounds = array<i64: 1>, scalar_prefetch = 0 : i64, scratch_operands = 0 : i64, tpu.core_type = #tpu.core_type<tc>, window_params = [{transform_indices = @transform_0, window_bounds = array<i64: 2, 8, 32>}, {pipeline_mode = #tpu.pipeline_mode<synchronous>, transform_indices = @transform_1, window_bounds = array<i64: 32, 16>}, {pipeline_mode = #tpu.pipeline_mode<synchronous>, transform_indices = @transform_2, window_bounds = array<i64: 32, 16>}, {pipeline_mode = #tpu.pipeline_mode<synchronous>, transform_indices = @transform_3, window_bounds = array<i64: 32, 16>}, {transform_indices = @transform_4, window_bounds = array<i64: 2, 8, 16>}]} {
    %c0 = arith.constant 0 : index
    %c0_0 = arith.constant 0 : index
    %c0_1 = arith.constant 0 : index
    %0 = vector.load %arg1[%c0, %c0_0, %c0_1] : memref<2x8x32xbf16, #tpu.memory_space<vmem>>, vector<2x8x32xbf16>
    %c0_2 = arith.constant 0 : index
    %c0_3 = arith.constant 0 : index
    %1 = vector.load %arg2[%c0_2, %c0_3] : memref<32x16xbf16, #tpu.memory_space<vmem>>, vector<32x16xbf16>
    %c0_4 = arith.constant 0 : index
    %c0_5 = arith.constant 0 : index
    %2 = vector.load %arg3[%c0_4, %c0_5] : memref<32x16xbf16, #tpu.memory_space<vmem>>, vector<32x16xbf16>
    %c0_6 = arith.constant 0 : index
    %c0_7 = arith.constant 0 : index
    %3 = vector.load %arg4[%c0_6, %c0_7] : memref<32x16xbf16, #tpu.memory_space<vmem>>, vector<32x16xbf16>
    "tpu.trace_start"() <{level = 10 : i32, message = "btc,ch->bth"}> : () -> ()
    %cst = arith.constant dense<0.000000e+00> : vector<2x8x16xf32>
    %4 = tpu.matmul %0, %1, %cst {dimension_numbers = #tpu.dot_dimension_numbers<[2], [0], [0, 1], [1], [0, 0, 0, 1, 1, 1], [], []>} : vector<2x8x32xbf16>, vector<32x16xbf16>, vector<2x8x16xf32> -> vector<2x8x16xf32>
    %cst_8 = arith.constant dense<0.000000e+00> : vector<2x8x16xf32>
    %5 = tpu.matmul %0, %2, %cst_8 {dimension_numbers = #tpu.dot_dimension_numbers<[2], [0], [0, 1], [1], [0, 0, 0, 1, 1, 1], [], []>} : vector<2x8x32xbf16>, vector<32x16xbf16>, vector<2x8x16xf32> -> vector<2x8x16xf32>
    %cst_9 = arith.constant dense<0.000000e+00> : vector<2x8x16xf32>
    %6 = tpu.matmul %0, %3, %cst_9 {dimension_numbers = #tpu.dot_dimension_numbers<[2], [0], [0, 1], [1], [0, 0, 0, 1, 1, 1], [], []>} : vector<2x8x32xbf16>, vector<32x16xbf16>, vector<2x8x16xf32> -> vector<2x8x16xf32>
    "tpu.trace_stop"() : () -> ()
    %7 = arith.truncf %5 : vector<2x8x16xf32> to vector<2x8x16xbf16>
    %8 = arith.truncf %4 : vector<2x8x16xf32> to vector<2x8x16xbf16>
    "tpu.trace_start"() <{level = 10 : i32, message = "bqh,bkh->bqk"}> : () -> ()
    %cst_10 = arith.constant dense<0.000000e+00> : vector<2x8x8xf32>
    %9 = tpu.matmul %7, %8, %cst_10 {dimension_numbers = #tpu.dot_dimension_numbers<[2], [2], [1], [1], [0, 0, 0, 1, 1, 1], [0], [0]>} : vector<2x8x16xbf16>, vector<2x8x16xbf16>, vector<2x8x8xf32> -> vector<2x8x8xf32>
    "tpu.trace_stop"() : () -> ()
    %cst_11 = arith.constant 0.176776692 : f32
    %10 = vector.broadcast %cst_11 : f32 to vector<2x8x8xf32>
    %11 = arith.mulf %9, %10 : vector<2x8x8xf32>
    %12 = tpu.iota {dimensions = array<i32: 0>} : vector<8x8xi32>
    %13 = tpu.iota {dimensions = array<i32: 1>} : vector<8x8xi32>
    %14 = arith.cmpi sle, %13, %12 : vector<8x8xi32>
    %15 = vector.shape_cast %14 : vector<8x8xi1> to vector<1x8x8xi1>
    %cst_12 = arith.constant 0xFF800000 : f32
    %16 = vector.shape_cast %15 : vector<1x8x8xi1> to vector<1x8x8xi1>
    %17 = vector.broadcast %16 : vector<1x8x8xi1> to vector<2x8x8xi1>
    %18 = vector.broadcast %cst_12 : f32 to vector<2x8x8xf32>
    %19 = arith.select %17, %11, %18 : vector<2x8x8xi1>, vector<2x8x8xf32>
    %cst_13 = arith.constant dense<0xFF800000> : vector<2x8xf32>
    %20 = vector.multi_reduction <maximumf>, %19, %cst_13 [2] : vector<2x8x8xf32> to vector<2x8xf32>
    %21 = vector.shape_cast %20 : vector<2x8xf32> to vector<2x8x1xf32>
    %22 = vector.broadcast %21 : vector<2x8x1xf32> to vector<2x8x8xf32>
    %23 = arith.subf %19, %22 : vector<2x8x8xf32>
    %24 = math.exp %23 : vector<2x8x8xf32>
    %cst_14 = arith.constant dense<0.000000e+00> : vector<2x8xf32>
    %25 = vector.multi_reduction <add>, %24, %cst_14 [2] : vector<2x8x8xf32> to vector<2x8xf32>
    %26 = vector.shape_cast %25 : vector<2x8xf32> to vector<2x8x1xf32>
    %27 = tpu.reciprocal %26 {approx = true} : vector<2x8x1xf32> -> vector<2x8x1xf32>
    %28 = vector.broadcast %27 : vector<2x8x1xf32> to vector<2x8x8xf32>
    %29 = arith.mulf %24, %28 : vector<2x8x8xf32>
    %30 = arith.truncf %29 : vector<2x8x8xf32> to vector<2x8x8xbf16>
    %31 = arith.truncf %6 : vector<2x8x16xf32> to vector<2x8x16xbf16>
    "tpu.trace_start"() <{level = 10 : i32, message = "bqk,bkh->bqh"}> : () -> ()
    %cst_15 = arith.constant dense<0.000000e+00> : vector<2x8x16xf32>
    %32 = tpu.matmul %30, %31, %cst_15 {dimension_numbers = #tpu.dot_dimension_numbers<[2], [1], [1], [2], [0, 0, 0, 1, 1, 2], [0], [0]>} : vector<2x8x8xbf16>, vector<2x8x16xbf16>, vector<2x8x16xf32> -> vector<2x8x16xf32>
    "tpu.trace_stop"() : () -> ()
    %c0_16 = arith.constant 0 : index
    %c0_17 = arith.constant 0 : index
    %c0_18 = arith.constant 0 : index
    %33 = vector.load %arg5[%c0_16, %c0_17, %c0_18] : memref<2x8x16xf32, #tpu.memory_space<vmem>>, vector<2x8x16xf32>
    tpu.vector_store %arg5[%c0_16, %c0_17, %c0_18], %32 {strides = array<i32>} : memref<2x8x16xf32, #tpu.memory_space<vmem>>, vector<2x8x16xf32>,
    return
  }
  func.func @transform_0(%arg0: i32) -> (i32, i32, i32) {
    %c0_i32 = arith.constant 0 : i32
    %c0_i32_0 = arith.constant 0 : i32
    %c0_i32_1 = arith.constant 0 : i32
    return %arg0, %c0_i32, %c0_i32_0 : i32, i32, i32
  }
  func.func @transform_1(%arg0: i32) -> (i32, i32) {
    %c0_i32 = arith.constant 0 : i32
    %c0_i32_0 = arith.constant 0 : i32
    %c0_i32_1 = arith.constant 0 : i32
    return %c0_i32, %c0_i32_0 : i32, i32
  }
  func.func @transform_2(%arg0: i32) -> (i32, i32) {
    %c0_i32 = arith.constant 0 : i32
    %c0_i32_0 = arith.constant 0 : i32
    %c0_i32_1 = arith.constant 0 : i32
    return %c0_i32, %c0_i32_0 : i32, i32
  }
  func.func @transform_3(%arg0: i32) -> (i32, i32) {
    %c0_i32 = arith.constant 0 : i32
    %c0_i32_0 = arith.constant 0 : i32
    %c0_i32_1 = arith.constant 0 : i32
    return %c0_i32, %c0_i32_0 : i32, i32
  }
  func.func @transform_4(%arg0: i32) -> (i32, i32, i32) {
    %c0_i32 = arith.constant 0 : i32
    %c0_i32_0 = arith.constant 0 : i32
    %c0_i32_1 = arith.constant 0 : i32
    return %arg0, %c0_i32, %c0_i32_0 : i32, i32, i32
  }
}

</mosaic_0001>

<llo_original>
// kernel: tpu_custom_call.1
$region0: #{tpu_custom_call.1}
  #allocation0 [shape = 'u32[]', space=smem, size = 0x4, offset = 0x4, fixed_abs, tag = 'smem constant byte address 0x4 - core index']
  #allocation1 [shape = 'u32[144,128]{1,0:T(1,128)}', space=vmem, size = 0x12000, scoped, tag = 'internal scratch']
  %s0 = inlined_call_operand.vmem [shape: bf16[2,8,32], index: 0, kind: input, shape index: {}]
  %s1 = inlined_call_operand.vmem [shape: bf16[32,16], index: 1, kind: input, shape index: {}]
  %s2 = inlined_call_operand.vmem [shape: bf16[32,16], index: 2, kind: input, shape index: {}]
  %s3 = inlined_call_operand.vmem [shape: bf16[32,16], index: 3, kind: input, shape index: {}]
  %s4 = inlined_call_operand.hbm [shape: f32[2,8,16], index: 4, kind: output, shape index: {}]
  %s5 = sld [smem:[#allocation0]]
  $region26: #{tpu_custom_call.1} parent=0
    _
  %s7 = ssub.s32 1, %s5
  %s8 = scalar_select 0, %s7, %s5
  $region1: #{tpu_custom_call.1} parent=0
    #allocation2 [shape = 'u8[8192]{0}', space=vmem, size = 0x2000, scoped, tag = 'output window, operand 0, single buffered']
    #allocation3 [shape = 's32[1]{0}', space=sflag, size = 0x4, scoped, tag = 'scoped memory for tpu_custom_call.1']
    %9 = vsyncpa [#allocation3], 0
    // Predicated region
    $region2: #{tpu_custom_call.1} parent=1 // pred_check
      _
    $region3: #{tpu_custom_call.1} parent=1 // pred_check_branch
      %11 = sbr.rel (0) target = $region5
    $region4: #{tpu_custom_call.1} parent=1 // pred_region
      _
    $region5: #{tpu_custom_call.1} parent=1 // pred_fallthru
      _
    // Predicated region
    $region6: #{tpu_custom_call.1} parent=1 // pred_check
      _
    $region7: #{tpu_custom_call.1} parent=1 // pred_check_branch
      %13 = sbr.rel (0) target = $region9
    $region8: #{tpu_custom_call.1} parent=1 // pred_region
      _
    $region9: #{tpu_custom_call.1} parent=1 // pred_fallthru
      _
    // Predicated region
    $region10: #{tpu_custom_call.1} parent=1 // pred_check
      _
    $region11: #{tpu_custom_call.1} parent=1 // pred_check_branch
      %15 = sbr.rel (0) target = $region13
    $region12: #{tpu_custom_call.1} parent=1 // pred_region
      _
    $region13: #{tpu_custom_call.1} parent=1 // pred_fallthru
      _
    // Predicated region
    $region14: #{tpu_custom_call.1} parent=1 // pred_check
      _
    $region15: #{tpu_custom_call.1} parent=1 // pred_check_branch
      %17 = sbr.rel (0) target = $region17
    $region16: #{tpu_custom_call.1} parent=1 // pred_region
      _
    $region17: #{tpu_custom_call.1} parent=1 // pred_fallthru
      _
    %v19 = vld [vmem:[%s0] sm:$0xf]
    %v20 = vld [vmem:[%s0 + $0x4] sm:$0xf]
    %v21 = vld [vmem:[%s1] sm:$0xf]
    %v22 = vld [vmem:[%s1 + $0x4] sm:$0xf]
    %v23 = vld [vmem:[%s1 + $0x8] sm:$0xf]
    %v24 = vld [vmem:[%s1 + $0xc] sm:$0xf]
    %v25 = vld [vmem:[%s2] sm:$0xf]
    %v26 = vld [vmem:[%s2 + $0x4] sm:$0xf]
    %v27 = vld [vmem:[%s2 + $0x8] sm:$0xf]
    %v28 = vld [vmem:[%s2 + $0xc] sm:$0xf]
    %v29 = vld [vmem:[%s3] sm:$0xf]
    %v30 = vld [vmem:[%s3 + $0x4] sm:$0xf]
    %v31 = vld [vmem:[%s3 + $0x8] sm:$0xf]
    %v32 = vld [vmem:[%s3 + $0xc] sm:$0xf]
    %v35 = vunpack.c.l.b16 %v19
    %v36 = vunpack.c.l.b16 %v20
    %v37 = vpack.c.b16 %v36, %v35
    %v42 = vunpack.c.l.b16 %v21
    %v43 = vunpack.c.l.b16 %v22
    %v44 = vunpack.c.l.b16 %v23
    %v45 = vunpack.c.l.b16 %v24
    %v46 = vpack.c.b16 %v43, %v42
    %v47 = vpack.c.b16 %v45, %v44
    %vm50 = vcmask 261120
    %v52 = vsel %vm50, %v37, 0
    %54 = vmatprep.subr.bf16.mxu0 0
    %55 = vmatpush1.bf16.msra.mxu0 %v46
    %56 = vmatprep.subr.bf16.mxu0 0
    %57 = vmatpush1.bf16.msra.mxu0 %v47
    %58 = vmatprep.subr.bf16.mxu0 0
    %59 = vmatpush1.bf16.msra.mxu0 0
    %60 = vmatprep.subr.bf16.mxu0 0
    %61 = vmatpush1.bf16.msra.mxu0 0
    %62 = vmatprep.subr.bf16.mxu0 0
    %63 = vmatpush1.bf16.msra.mxu0 0
    %64 = vmatprep.subr.bf16.mxu0 0
    %65 = vmatpush1.bf16.msra.mxu0 0
    %66 = vmatprep.subr.bf16.mxu0 0
    %67 = vmatpush1.bf16.msra.mxu0 0
    %68 = vmatprep.subr.bf16.mxu0 0
    %69 = vmatpush1.bf16.msra.mxu0 0
    %70 = vmatprep.subr.bf16.mxu0 0
    %71 = vmatpush1.bf16.msra.mxu0 0
    %72 = vmatprep.subr.bf16.mxu0 0
    %73 = vmatpush1.bf16.msra.mxu0 0
    %74 = vmatprep.subr.bf16.mxu0 0
    %75 = vmatpush1.bf16.msra.mxu0 0
    %76 = vmatprep.subr.bf16.mxu0 0
    %77 = vmatpush1.bf16.msra.mxu0 0
    %78 = vmatprep.subr.bf16.mxu0 0
    %79 = vmatpush1.bf16.msra.mxu0 0
    %80 = vmatprep.subr.bf16.mxu0 0
    %81 = vmatpush1.bf16.msra.mxu0 0
    %82 = vmatprep.subr.bf16.mxu0 0
    %83 = vmatpush1.bf16.msra.mxu0 0
    %84 = vmatprep.subr.bf16.mxu0 0
    %85 = vmatpush1.bf16.msra.mxu0 0
    %86 = vmatprep.mubr.bf16.mxu0 0
    %87 = vmatmul.mubr.bf16.gmra.mrb[0].mxu0 %v52
    %v88 = vpop.f32.mrb[0].mxu0
    %v89 = vadd.f32 0.0, %v88
    %v90 = vpop.f32.mrb[0].mxu0
    %v91 = vpop.f32.mrb[0].mxu0
    %v92 = vadd.f32 0.0, %v91
    %v93 = vpop.f32.mrb[0].mxu0
    %94 = vdwg.mxu0
    %v99 = vunpack.c.l.b16 %v25
    %v100 = vunpack.c.l.b16 %v26
    %v101 = vunpack.c.l.b16 %v27
    %v102 = vunpack.c.l.b16 %v28
    %v103 = vpack.c.b16 %v100, %v99
    %v104 = vpack.c.b16 %v102, %v101
    %107 = vmatprep.subr.bf16.mxu0 0
    %108 = vmatpush1.bf16.msra.mxu0 %v103
    %109 = vmatprep.subr.bf16.mxu0 0
    %110 = vmatpush1.bf16.msra.mxu0 %v104
    %111 = vmatprep.subr.bf16.mxu0 0
    %112 = vmatpush1.bf16.msra.mxu0 0
    %113 = vmatprep.subr.bf16.mxu0 0
    %114 = vmatpush1.bf16.msra.mxu0 0
    %115 = vmatprep.subr.bf16.mxu0 0
    %116 = vmatpush1.bf16.msra.mxu0 0
    %117 = vmatprep.subr.bf16.mxu0 0
    %118 = vmatpush1.bf16.msra.mxu0 0
    %119 = vmatprep.subr.bf16.mxu0 0
    %120 = vmatpush1.bf16.msra.mxu0 0
    %121 = vmatprep.subr.bf16.mxu0 0
    %122 = vmatpush1.bf16.msra.mxu0 0
    %123 = vmatprep.subr.bf16.mxu0 0
    %124 = vmatpush1.bf16.msra.mxu0 0
    %125 = vmatprep.subr.bf16.mxu0 0
    %126 = vmatpush1.bf16.msra.mxu0 0
    %127 = vmatprep.subr.bf16.mxu0 0
    %128 = vmatpush1.bf16.msra.mxu0 0
    %129 = vmatprep.subr.bf16.mxu0 0
    %130 = vmatpush1.bf16.msra.mxu0 0
    %131 = vmatprep.subr.bf16.mxu0 0
    %132 = vmatpush1.bf16.msra.mxu0 0
    %133 = vmatprep.subr.bf16.mxu0 0
    %134 = vmatpush1.bf16.msra.mxu0 0
    %135 = vmatprep.subr.bf16.mxu0 0
    %136 = vmatpush1.bf16.msra.mxu0 0
    %137 = vmatprep.subr.bf16.mxu0 0
    %138 = vmatpush1.bf16.msra.mxu0 0
    %139 = vmatprep.mubr.bf16.mxu0 0
    %140 = vmatmul.mubr.bf16.gmra.mrb[0].mxu0 %v52
    %v141 = vpop.f32.mrb[0].mxu0
    %v142 = vadd.f32 0.0, %v141
    %v143 = vpop.f32.mrb[0].mxu0
    %v144 = vpop.f32.mrb[0].mxu0
    %v145 = vadd.f32 0.0, %v144
    %v146 = vpop.f32.mrb[0].mxu0
    %147 = vdwg.mxu0
    %v152 = vunpack.c.l.b16 %v29
    %v153 = vunpack.c.l.b16 %v30
    %v154 = vunpack.c.l.b16 %v31
    %v155 = vunpack.c.l.b16 %v32
    %v156 = vpack.c.b16 %v153, %v152
    %v157 = vpack.c.b16 %v155, %v154
    %160 = vmatprep.subr.bf16.mxu0 0
    %161 = vmatpush1.bf16.msra.mxu0 %v156
    %162 = vmatprep.subr.bf16.mxu0 0
    %163 = vmatpush1.bf16.msra.mxu0 %v157
    %164 = vmatprep.subr.bf16.mxu0 0
    %165 = vmatpush1.bf16.msra.mxu0 0
    %166 = vmatprep.subr.bf16.mxu0 0
    %167 = vmatpush1.bf16.msra.mxu0 0
    %168 = vmatprep.subr.bf16.mxu0 0
    %169 = vmatpush1.bf16.msra.mxu0 0
    %170 = vmatprep.subr.bf16.mxu0 0
    %171 = vmatpush1.bf16.msra.mxu0 0
    %172 = vmatprep.subr.bf16.mxu0 0
    %173 = vmatpush1.bf16.msra.mxu0 0
    %174 = vmatprep.subr.bf16.mxu0 0
    %175 = vmatpush1.bf16.msra.mxu0 0
    %176 = vmatprep.subr.bf16.mxu0 0
    %177 = vmatpush1.bf16.msra.mxu0 0
    %178 = vmatprep.subr.bf16.mxu0 0
    %179 = vmatpush1.bf16.msra.mxu0 0
    %180 = vmatprep.subr.bf16.mxu0 0
    %181 = vmatpush1.bf16.msra.mxu0 0
    %182 = vmatprep.subr.bf16.mxu0 0
    %183 = vmatpush1.bf16.msra.mxu0 0
    %184 = vmatprep.subr.bf16.mxu0 0
    %185 = vmatpush1.bf16.msra.mxu0 0
    %186 = vmatprep.subr.bf16.mxu0 0
    %187 = vmatpush1.bf16.msra.mxu0 0
    %188 = vmatprep.subr.bf16.mxu0 0
    %189 = vmatpush1.bf16.msra.mxu0 0
    %190 = vmatprep.subr.bf16.mxu0 0
    %191 = vmatpush1.bf16.msra.mxu0 0
    %192 = vmatprep.mubr.bf16.mxu0 0
    %193 = vmatmul.mubr.bf16.gmra.mrb[0].mxu0 %v52
    %v194 = vpop.f32.mrb[0].mxu0
    %v195 = vadd.f32 0.0, %v194
    %v196 = vpop.f32.mrb[0].mxu0
    %v197 = vpop.f32.mrb[0].mxu0
    %v198 = vadd.f32 0.0, %v197
    %v199 = vpop.f32.mrb[0].mxu0
    %200 = vdwg.mxu0
    %v201 = vpack.c.bf16 %v142, %v142
    %v202 = vpack.c.bf16 %v145, %v145
    %v203 = vpack.c.bf16 %v89, %v89
    %v204 = vpack.c.bf16 %v92, %v92
    %vm205 = vcmask 130048
    %v207 = vsel %vm205, %v201, 0
    %v210 = vsel %vm205, %v203, 0
    %212 = vmatprep.subr.bf16.mxu0 0
    %213 = vmatpush1.bf16.xpose.msra.mxu0 %v210
    %214 = vmatprep.subr.bf16.mxu0 0
    %215 = vmatpush1.bf16.xpose.msra.mxu0 0
    %216 = vmatprep.subr.bf16.mxu0 0
    %217 = vmatpush1.bf16.xpose.msra.mxu0 0
    %218 = vmatprep.subr.bf16.mxu0 0
    %219 = vmatpush1.bf16.xpose.msra.mxu0 0
    %220 = vmatprep.subr.bf16.mxu0 0
    %221 = vmatpush1.bf16.xpose.msra.mxu0 0
    %222 = vmatprep.subr.bf16.mxu0 0
    %223 = vmatpush1.bf16.xpose.msra.mxu0 0
    %224 = vmatprep.subr.bf16.mxu0 0
    %225 = vmatpush1.bf16.xpose.msra.mxu0 0
    %226 = vmatprep.subr.bf16.mxu0 0
    %227 = vmatpush1.bf16.xpose.msra.mxu0 0
    %228 = vmatprep.subr.bf16.mxu0 0
    %229 = vmatpush1.bf16.xpose.msra.mxu0 0
    %230 = vmatprep.subr.bf16.mxu0 0
    %231 = vmatpush1.bf16.xpose.msra.mxu0 0
    %232 = vmatprep.subr.bf16.mxu0 0
    %233 = vmatpush1.bf16.xpose.msra.mxu0 0
    %234 = vmatprep.subr.bf16.mxu0 0
    %235 = vmatpush1.bf16.xpose.msra.mxu0 0
    %236 = vmatprep.subr.bf16.mxu0 0
    %237 = vmatpush1.bf16.xpose.msra.mxu0 0
    %238 = vmatprep.subr.bf16.mxu0 0
    %239 = vmatpush1.bf16.xpose.msra.mxu0 0
    %240 = vmatprep.subr.bf16.mxu0 0
    %241 = vmatpush1.bf16.xpose.msra.mxu0 0
    %242 = vmatprep.subr.bf16.mxu0 0
    %243 = vmatpush1.bf16.xpose.msra.mxu0 0
    %244 = vmatprep.mubr.bf16.mxu0 0
    %245 = vmatmul.mubr.bf16.gmra.mrb[0].mxu0 %v207
    %v246 = vpop.f32.mrb[0].mxu0
    %v247 = vadd.f32 0.0, %v246
    %v248 = vpop.f32.mrb[0].mxu0
    %v249 = vpop.f32.mrb[0].mxu0
    %v250 = vpop.f32.mrb[0].mxu0
    %251 = vdwg.mxu0
    %v253 = vsel %vm205, %v202, 0
    %v256 = vsel %vm205, %v204, 0
    %258 = vmatprep.subr.bf16.mxu0 0
    %259 = vmatpush1.bf16.xpose.msra.mxu0 %v256
    %260 = vmatprep.subr.bf16.mxu0 0
    %261 = vmatpush1.bf16.xpose.msra.mxu0 0
    %262 = vmatprep.subr.bf16.mxu0 0
    %263 = vmatpush1.bf16.xpose.msra.mxu0 0
    %264 = vmatprep.subr.bf16.mxu0 0
    %265 = vmatpush1.bf16.xpose.msra.mxu0 0
    %266 = vmatprep.subr.bf16.mxu0 0
    %267 = vmatpush1.bf16.xpose.msra.mxu0 0
    %268 = vmatprep.subr.bf16.mxu0 0
    %269 = vmatpush1.bf16.xpose.msra.mxu0 0
    %270 = vmatprep.subr.bf16.mxu0 0
    %271 = vmatpush1.bf16.xpose.msra.mxu0 0
    %272 = vmatprep.subr.bf16.mxu0 0
    %273 = vmatpush1.bf16.xpose.msra.mxu0 0
    %274 = vmatprep.subr.bf16.mxu0 0
    %275 = vmatpush1.bf16.xpose.msra.mxu0 0
    %276 = vmatprep.subr.bf16.mxu0 0
    %277 = vmatpush1.bf16.xpose.msra.mxu0 0
    %278 = vmatprep.subr.bf16.mxu0 0
    %279 = vmatpush1.bf16.xpose.msra.mxu0 0
    %280 = vmatprep.subr.bf16.mxu0 0
    %281 = vmatpush1.bf16.xpose.msra.mxu0 0
    %282 = vmatprep.subr.bf16.mxu0 0
    %283 = vmatpush1.bf16.xpose.msra.mxu0 0
    %284 = vmatprep.subr.bf16.mxu0 0
    %285 = vmatpush1.bf16.xpose.msra.mxu0 0
    %286 = vmatprep.subr.bf16.mxu0 0
    %287 = vmatpush1.bf16.xpose.msra.mxu0 0
    %288 = vmatprep.subr.bf16.mxu0 0
    %289 = vmatpush1.bf16.xpose.msra.mxu0 0
    %290 = vmatprep.mubr.bf16.mxu0 0
    %291 = vmatmul.mubr.bf16.gmra.mrb[0].mxu0 %v253
    %v292 = vpop.f32.mrb[0].mxu0
    %v293 = vadd.f32 0.0, %v292
    %v294 = vpop.f32.mrb[0].mxu0
    %v295 = vpop.f32.mrb[0].mxu0
    %v296 = vpop.f32.mrb[0].mxu0
    %297 = vdwg.mxu0
    %v298 = vmul.f32 %v247, 0.17677669
    %v299 = vmul.f32 %v293, 0.17677669
    %v300 = vlaneseq
    %v301 = vshrl.u32 %v300, 7
    %v302 = vlaneseq
    %v303 = vand.u32 %v302, 127
    %vm304 = vcmp.le.s32.totalorder %v303, %v301
    %v305 = vsel %vm304, 1, 0
    %vm306 = vcmp.eq.s32.totalorder %v305, 1
    %v307 = vsel %vm306, %v298, -inf
    %v308 = vsel %vm306, %v299, -inf
    %vm309 = vcmask 64512
    %v310 = vsel %vm309, %v307, -inf
    %311 = vmax.xlane.f32.xlu0 %v310
    %v312 = vpop.xlane.xlu0 %311
    %v313 = vsel %vm309, %v308, -inf
    %314 = vmax.xlane.f32.xlu0 %v313
    %v315 = vpop.xlane.xlu0 %314
    %v316 = vsub.f32 %v307, %v312
    %v317 = vsub.f32 %v308, %v315
    %v318 = vmul.f32 %v316, 1.442695
    %v319 = vpow.pop %v318
    %v320 = vmul.f32 %v317, 1.442695
    %v321 = vpow.pop %v320
    %v322 = vsel %vm309, %v319, 0.0
    %323 = vadd.xlane.f32.xlu0 %v322
    %v324 = vpop.xlane.xlu0 %323
    %v325 = vsel %vm309, %v321, 0.0
    %326 = vadd.xlane.f32.xlu0 %v325
    %v327 = vpop.xlane.xlu0 %326
    %v328 = vrcp.pop %v324
    %v329 = vrcp.pop %v327
    %v330 = vmul.f32 %v319, %v328
    %v331 = vmul.f32 %v321, %v329
    %v332 = vpack.c.bf16 %v330, %v330
    %v333 = vpack.c.bf16 %v331, %v331
    %v334 = vpack.c.bf16 %v195, %v195
    %v335 = vpack.c.bf16 %v198, %v198
    %v337 = vsel %vm309, %v332, 0
    %vm339 = vcmask 1043456
    %v341 = vsel %vm339, %v334, 0
    %343 = vmatprep.subr.bf16.mxu0 0
    %344 = vmatpush1.bf16.msra.mxu0 %v341
    %345 = vmatprep.subr.bf16.mxu0 0
    %346 = vmatpush1.bf16.msra.mxu0 0
    %347 = vmatprep.subr.bf16.mxu0 0
    %348 = vmatpush1.bf16.msra.mxu0 0
    %349 = vmatprep.subr.bf16.mxu0 0
    %350 = vmatpush1.bf16.msra.mxu0 0
    %351 = vmatprep.subr.bf16.mxu0 0
    %352 = vmatpush1.bf16.msra.mxu0 0
    %353 = vmatprep.subr.bf16.mxu0 0
    %354 = vmatpush1.bf16.msra.mxu0 0
    %355 = vmatprep.subr.bf16.mxu0 0
    %356 = vmatpush1.bf16.msra.mxu0 0
    %357 = vmatprep.subr.bf16.mxu0 0
    %358 = vmatpush1.bf16.msra.mxu0 0
    %359 = vmatprep.subr.bf16.mxu0 0
    %360 = vmatpush1.bf16.msra.mxu0 0
    %361 = vmatprep.subr.bf16.mxu0 0
    %362 = vmatpush1.bf16.msra.mxu0 0
    %363 = vmatprep.subr.bf16.mxu0 0
    %364 = vmatpush1.bf16.msra.mxu0 0
    %365 = vmatprep.subr.bf16.mxu0 0
    %366 = vmatpush1.bf16.msra.mxu0 0
    %367 = vmatprep.subr.bf16.mxu0 0
    %368 = vmatpush1.bf16.msra.mxu0 0
    %369 = vmatprep.subr.bf16.mxu0 0
    %370 = vmatpush1.bf16.msra.mxu0 0
    %371 = vmatprep.subr.bf16.mxu0 0
    %372 = vmatpush1.bf16.msra.mxu0 0
    %373 = vmatprep.subr.bf16.mxu0 0
    %374 = vmatpush1.bf16.msra.mxu0 0
    %375 = vmatprep.mubr.bf16.mxu0 0
    %376 = vmatmul.mubr.bf16.gmra.mrb[0].mxu0 %v337
    %v377 = vpop.f32.mrb[0].mxu0
    %v378 = vadd.f32 0.0, %v377
    %v379 = vpop.f32.mrb[0].mxu0
    %v380 = vpop.f32.mrb[0].mxu0
    %v381 = vpop.f32.mrb[0].mxu0
    %382 = vdwg.mxu0
    %v384 = vsel %vm309, %v333, 0
    %v387 = vsel %vm339, %v335, 0
    %389 = vmatprep.subr.bf16.mxu0 0
    %390 = vmatpush1.bf16.msra.mxu0 %v387
    %391 = vmatprep.subr.bf16.mxu0 0
    %392 = vmatpush1.bf16.msra.mxu0 0
    %393 = vmatprep.subr.bf16.mxu0 0
    %394 = vmatpush1.bf16.msra.mxu0 0
    %395 = vmatprep.subr.bf16.mxu0 0
    %396 = vmatpush1.bf16.msra.mxu0 0
    %397 = vmatprep.subr.bf16.mxu0 0
    %398 = vmatpush1.bf16.msra.mxu0 0
    %399 = vmatprep.subr.bf16.mxu0 0
    %400 = vmatpush1.bf16.msra.mxu0 0
    %401 = vmatprep.subr.bf16.mxu0 0
    %402 = vmatpush1.bf16.msra.mxu0 0
    %403 = vmatprep.subr.bf16.mxu0 0
    %404 = vmatpush1.bf16.msra.mxu0 0
    %405 = vmatprep.subr.bf16.mxu0 0
    %406 = vmatpush1.bf16.msra.mxu0 0
    %407 = vmatprep.subr.bf16.mxu0 0
    %408 = vmatpush1.bf16.msra.mxu0 0
    %409 = vmatprep.subr.bf16.mxu0 0
    %410 = vmatpush1.bf16.msra.mxu0 0
    %411 = vmatprep.subr.bf16.mxu0 0
    %412 = vmatpush1.bf16.msra.mxu0 0
    %413 = vmatprep.subr.bf16.mxu0 0
    %414 = vmatpush1.bf16.msra.mxu0 0
    %415 = vmatprep.subr.bf16.mxu0 0
    %416 = vmatpush1.bf16.msra.mxu0 0
    %417 = vmatprep.subr.bf16.mxu0 0
    %418 = vmatpush1.bf16.msra.mxu0 0
    %419 = vmatprep.subr.bf16.mxu0 0
    %420 = vmatpush1.bf16.msra.mxu0 0
    %421 = vmatprep.mubr.bf16.mxu0 0
    %422 = vmatmul.mubr.bf16.gmra.mrb[0].mxu0 %v384
    %v423 = vpop.f32.mrb[0].mxu0
    %v424 = vadd.f32 0.0, %v423
    %v425 = vpop.f32.mrb[0].mxu0
    %v426 = vpop.f32.mrb[0].mxu0
    %v427 = vpop.f32.mrb[0].mxu0
    %428 = vdwg.mxu0
    %429 = vst.msk [vmem:[#allocation2] sm:$0xff] %vm205, %v378
    %430 = vst.msk [vmem:[#allocation2 + $0x8] sm:$0xff] %vm205, %v424
    // Predicated region
    $region18: #{tpu_custom_call.1} parent=1 // pred_check
      _
    $region19: #{tpu_custom_call.1} parent=1 // pred_check_branch
      %432 = sbr.rel (0) target = $region21
    $region20: #{tpu_custom_call.1} parent=1 // pred_region
      %s434 = ssub.s32 256, 256
      %435 = vsyncadd [#allocation3], %s434
      %s436 = sshll.u32 [#allocation2], 4
      %s437 = int_to_ptr.vmem [resolvable:$true] %s436
      %442 = dma.vmem_to_hbm [thread:$0]  %s437, 256, %s4, [#allocation3], 128, 128, 8
    $region21: #{tpu_custom_call.1} parent=1 // pred_fallthru
      _
    // Predicated region
    $region22: #{tpu_custom_call.1} parent=1 // pred_check
      _
    $region23: #{tpu_custom_call.1} parent=1 // pred_check_branch
      %444 = sbr.rel (0) target = $region25
    $region24: #{tpu_custom_call.1} parent=1 // pred_region
      %445 = dma.done [#allocation3], 256
    $region25: #{tpu_custom_call.1} parent=1 // pred_fallthru
      _
    %446 = vsyncpa [#allocation3], 1

</llo_original>
